<compile_context>
chip_gen: v7x
topology: tpu7x:2x2x1
jax: 0.10.0
libtpu: 0.0.40
codegen_flags: <defaults>
</compile_context>

<pallas_src>
import jax
import jax.numpy as jnp
from jax.experimental import pallas as pl
from jax.experimental.pallas import tpu as pltpu


_SUBLANE = 8
_LANE = 128
# Per-tile budget: x4 (in + out, double-buffered) = ~12 MiB, safe on every
# generation's default scoped VMEM (v5e 16 MiB, v6e/v7x 32 MiB) and already past
# the measured ~85% copy-roofline saturation point.
_TILE_BUDGET_BYTES = 3 * 1024 * 1024
_FALLBACK_CAP_BYTES = 3 * 1024 * 1024  # max single-block copy for ragged shapes


# ----------------------------------------------------------------------------- kernel

def _identity_copy_kernel(x_ref, o_ref):
    # Lane- and sublane-dense identity copy of one tile of the flattened slab.
    o_ref[...] = x_ref[...]


# ----------------------------------------------------------------------------- copy path

def _materialized_flatten(x2):
    """Identity-copy the (N, F) slab through a Pallas kernel, near the HBM roofline."""
    n, f = x2.shape
    total = n * f
    itemsize = x2.dtype.itemsize
    total_bytes = total * itemsize
    cost = pl.CostEstimate(flops=0, transcendentals=0, bytes_accessed=2 * total_bytes)

    if total % (_SUBLANE * _LANE) == 0:
        # --- Sublane+lane-dense path: copy as (R, C) with C % 128 == 0, R % 8 == 0.
        c = _LANE  # always valid here since total % 1024 == 0
        for cand in (8192, 4096, 2048, 1024, 512, 256, _LANE):
            if total % cand == 0 and (total // cand) % _SUBLANE == 0:
                c = cand
                break
        r = total // c

        # Largest multiple-of-8 row tile that divides R and fits the tile budget.
        max_rows = max(_SUBLANE,
                       (_TILE_BUDGET_BYTES // (c * itemsize)) // _SUBLANE * _SUBLANE)
        start = min(r, max_rows)
        start -= start % _SUBLANE
        tr = _SUBLANE
        for cand in range(start, _SUBLANE - 1, -_SUBLANE):
            if r % cand == 0:
                tr = cand
                break

        # v7x has 2 TensorCores sharing HBM: make sure the "parallel" axis has at
        # least 2 programs whenever the slab can be split into legal >=8-row tiles.
        if r // tr < 2 and r >= 2 * _SUBLANE:
            half = (r // 2) - (r // 2) % _SUBLANE
            for cand in range(half, _SUBLANE - 1, -_SUBLANE):
                if r % cand == 0:
                    tr = cand
                    break

        tile_bytes = tr * c * itemsize
        # Real 4-buffer footprint + headroom, never below the smallest default.
        vmem_limit = max(16 * 1024 * 1024, 4 * tile_bytes + 4 * 1024 * 1024)

        xc = jnp.reshape(x2, (r, c))  # free metadata reshape
        out = pl.pallas_call(
            _identity_copy_kernel,
            out_shape=jax.ShapeDtypeStruct((r, c), xc.dtype),
            grid=(r // tr,),
            in_specs=[pl.BlockSpec((tr, c), lambda i: (i, 0))],
            out_specs=pl.BlockSpec((tr, c), lambda i: (i, 0)),
            input_output_aliases={0: 0},
            cost_estimate=cost,
            compiler_params=pltpu.CompilerParams(
                dimension_semantics=("parallel",),
                vmem_limit_bytes=vmem_limit,
            ),
        )(xc)
        return jnp.reshape(out, (n, f))  # free metadata reshape

    # --- Ragged fallback (total not a multiple of 8*128): bounded single block. ---
    if total_bytes <= _FALLBACK_CAP_BYTES:
        return pl.pallas_call(
            _identity_copy_kernel,
            out_shape=jax.ShapeDtypeStruct((n, f), x2.dtype),
            grid=(1,),
            in_specs=[pl.BlockSpec((n, f), lambda i: (0, 0))],
            out_specs=pl.BlockSpec((n, f), lambda i: (0, 0)),
            input_output_aliases={0: 0},
            cost_estimate=cost,
            compiler_params=pltpu.CompilerParams(
                dimension_semantics=("arbitrary",),
                vmem_limit_bytes=16 * 1024 * 1024,
            ),
        )(x2)

    # Too big to copy as one ragged block without risking scoped-VMEM OOM; the copy
    # is semantically a no-op, so return the free reshape instead.
    # TODO(synk): torch .view never materializes; a tiled ragged copy is not worth
    #             emulating for this edge case.
    return x2


# ----------------------------------------------------------------------------- wrapper

def view_flatten(x, *, materialize=False):
    """Equivalent of `x.view(x.size(0), -1)` (ViewFlatten.forward).

    torch .view on a contiguous tensor is a zero-copy metadata reshape, so by
    default this returns the free row-major jnp.reshape (no kernel dispatch, no
    2x HBM round trip).  Pass materialize=True to force the Pallas identity-copy
    kernel when a freshly materialized buffer is required.
    """
    n = x.shape[0]
    f = 1
    for d in x.shape[1:]:
        f *= d
    # Row-major reshape == .view on a contiguous NCHW tensor (metadata only).
    x2 = jnp.reshape(x, (n, f))
    if not materialize:
        return x2
    return _materialized_flatten(x2)


# ----------------------------------------------------------------------------- main

if __name__ == "__main__":
    key = jax.random.PRNGKey(0)

    # Small CIFAR-like activation: batch=2, channels=4, spatial=16x16 (NCHW).
    x = jax.random.normal(key, (2, 4, 16, 16), jnp.float32)
    ref = jnp.reshape(x, (x.shape[0], -1))  # reference: row-major flatten (= .view)

    # Default path: zero-copy metadata reshape (what torch .view actually is).
    out_view = jax.block_until_ready(view_flatten(x))
    assert out_view.shape == (2, 4 * 16 * 16), out_view.shape
    assert jnp.array_equal(out_view, ref)

    # Forced-materialization path: exercises the Pallas identity-copy kernel.
    out_copy = jax.block_until_ready(view_flatten(x, materialize=True))
    assert out_copy.shape == (2, 4 * 16 * 16), out_copy.shape
    assert jnp.array_equal(out_copy, ref)
    assert jnp.all(jnp.isfinite(out_copy))

    print("KERNEL_OK")
</pallas_src>

<mosaic_0001>
module attributes {stable_mosaic.version = 11 : i64} {
  func.func @_identity_copy_kernel(%arg0: i32, %arg1: memref<8x256xf32, #tpu.memory_space<vmem>>, %arg2: memref<8x256xf32, #tpu.memory_space<vmem>>) attributes {dimension_semantics = [#tpu.dimension_semantics<parallel>], iteration_bounds = array<i64: 1>, scalar_prefetch = 0 : i64, scratch_operands = 0 : i64, tpu.core_type = #tpu.core_type<tc>, window_params = [{transform_indices = @transform_0, window_bounds = array<i64: 8, 256>}, {transform_indices = @transform_1, window_bounds = array<i64: 8, 256>}]} {
    %c0 = arith.constant 0 : index
    %c0_0 = arith.constant 0 : index
    %0 = vector.load %arg1[%c0, %c0_0] : memref<8x256xf32, #tpu.memory_space<vmem>>, vector<8x256xf32>
    %c0_1 = arith.constant 0 : index
    %c0_2 = arith.constant 0 : index
    %1 = vector.load %arg2[%c0_1, %c0_2] : memref<8x256xf32, #tpu.memory_space<vmem>>, vector<8x256xf32>
    tpu.vector_store %arg2[%c0_1, %c0_2], %0 {strides = array<i32>} : memref<8x256xf32, #tpu.memory_space<vmem>>, vector<8x256xf32>,
    return
  }
  func.func @transform_0(%arg0: i32) -> (i32, i32) {
    %c0_i32 = arith.constant 0 : i32
    %c0_i32_0 = arith.constant 0 : i32
    return %arg0, %c0_i32 : i32, i32
  }
  func.func @transform_1(%arg0: i32) -> (i32, i32) {
    %c0_i32 = arith.constant 0 : i32
    %c0_i32_0 = arith.constant 0 : i32
    return %arg0, %c0_i32 : i32, i32
  }
}

</mosaic_0001>

<llo_original>
// kernel: tpu_custom_call.1
$region0: #{tpu_custom_call.1}
  #allocation0 [shape = 'u32[]', space=smem, size = 0x4, offset = 0x4, fixed_abs, tag = 'smem constant byte address 0x4 - core index']
  #allocation1 [shape = 'u32[144,128]{1,0:T(1,128)}', space=vmem, size = 0x12000, scoped, tag = 'internal scratch']
  %s0 = inlined_call_operand.hbm [shape: f32[8,256], index: 0, kind: input, shape index: {}, may-alias: {0,1}]
  %s1 = inlined_call_operand.hbm [shape: f32[8,256], index: 1, kind: output, shape index: {}, may-alias: {0,1}]
  %s2 = sld [smem:[#allocation0]]
  $region18: #{tpu_custom_call.1} parent=0
    _
  %s4 = ssub.s32 1, %s2
  %s5 = scalar_select 0, %s4, %s2
  $region1: #{tpu_custom_call.1} parent=0
    #allocation2 [shape = 'u8[8192]{0}', space=vmem, size = 0x2000, scoped, tag = 'input window, operand 0, single buffered']
    #allocation3 [shape = 's32[1]{0}', space=sflag, size = 0x4, scoped, tag = 'scoped memory for tpu_custom_call.1']
    #allocation4 [shape = 's32[1]{0}', space=sflag, size = 0x4, scoped, tag = 'scoped memory for tpu_custom_call.1']
    #allocation5 [shape = 'u8[8192]{0}', space=vmem, size = 0x2000, scoped, tag = 'output window, operand 0, single buffered']
    %6 = vsyncpa [#allocation3], 0
    %7 = vsyncpa [#allocation4], 0
    // Predicated region
    $region2: #{tpu_custom_call.1} parent=1 // pred_check
      _
    $region3: #{tpu_custom_call.1} parent=1 // pred_check_branch
      %9 = sbr.rel (0) target = $region5
    $region4: #{tpu_custom_call.1} parent=1 // pred_region
      %s11 = ssub.s32 256, 256
      %12 = vsyncadd [#allocation3], %s11
      %s14 = sshll.u32 [#allocation2], 4
      %s15 = int_to_ptr.vmem [resolvable:$true] %s14
      %17 = dma.hbm_to_vmem [thread:$0]  %s0, 256, %s15, [#allocation3]
    $region5: #{tpu_custom_call.1} parent=1 // pred_fallthru
      _
    // Predicated region
    $region6: #{tpu_custom_call.1} parent=1 // pred_check
      _
    $region7: #{tpu_custom_call.1} parent=1 // pred_check_branch
      %19 = sbr.rel (0) target = $region9
    $region8: #{tpu_custom_call.1} parent=1 // pred_region
      %20 = dma.done [#allocation3], 256
    $region9: #{tpu_custom_call.1} parent=1 // pred_fallthru
      _
    %v21 = vld [vmem:[#allocation2] sm:$0xff]
    %v22 = vld [vmem:[#allocation2 + $0x8] sm:$0xff]
    %23 = vst [vmem:[#allocation5] sm:$0xff] %v21
    %24 = vst [vmem:[#allocation5 + $0x8] sm:$0xff] %v22
    // Predicated region
    $region10: #{tpu_custom_call.1} parent=1 // pred_check
      _
    $region11: #{tpu_custom_call.1} parent=1 // pred_check_branch
      %26 = sbr.rel (0) target = $region13
    $region12: #{tpu_custom_call.1} parent=1 // pred_region
      %s28 = ssub.s32 256, 256
      %29 = vsyncadd [#allocation4], %s28
      %s31 = sshll.u32 [#allocation5], 4
      %s32 = int_to_ptr.vmem [resolvable:$true] %s31
      %34 = dma.vmem_to_hbm [thread:$0]  %s32, 256, %s1, [#allocation4]
    $region13: #{tpu_custom_call.1} parent=1 // pred_fallthru
      _
    // Predicated region
    $region14: #{tpu_custom_call.1} parent=1 // pred_check
      _
    $region15: #{tpu_custom_call.1} parent=1 // pred_check_branch
      %36 = sbr.rel (0) target = $region17
    $region16: #{tpu_custom_call.1} parent=1 // pred_region
      %37 = dma.done [#allocation4], 256
    $region17: #{tpu_custom_call.1} parent=1 // pred_fallthru
      _
    %38 = vsyncpa [#allocation3], 1
    %39 = vsyncpa [#allocation4], 1

</llo_original>
